<compile_context>
chip_gen: v6e
topology: v6e:2x2x1
jax: 0.10.0
libtpu: 0.0.40
codegen_flags: <defaults>
</compile_context>

<pallas_src>
import functools

import numpy as np

import jax
import jax.numpy as jnp
from jax.experimental import pallas as pl
from jax.experimental.pallas import tpu as pltpu


_LANE = 128
# Dense [Re|Im] bf16 DFT matrix byte ceiling; above this fall back to XLA's FFT.
_DENSE_DFT_BYTES_LIMIT = 16 * 1024 * 1024


def _round_up(x, m):
    return ((x + m - 1) // m) * m


def _freq_l1_kernel(*refs, n_rows, hf_pad, n_preds, has_tail):
    """One grid step: a block of `bt` flattened images per prediction.

    refs = (p_0, ..., p_{n_preds-1}, target, dft, freq_out, l1_out)
      p_i / target  : (bt, H*W)   native float dtype (cast in-kernel)
      dft           : (H*W, 2*hf_pad) bf16, columns = [Re | 0-pad | Im | 0-pad]
      freq_out/l1_out: (1, 1) f32 per-block partial sums.
    """
    p_refs = refs[:n_preds]
    t_ref = refs[n_preds]
    dft_ref = refs[n_preds + 1]
    freq_ref = refs[n_preds + 2]
    l1_ref = refs[n_preds + 3]

    t = t_ref[...].astype(jnp.float32)
    bt = t.shape[0]

    if has_tail:
        i = pl.program_id(0)
        row = jax.lax.broadcasted_iota(jnp.int32, t.shape, 0) + i * bt
        valid = row < n_rows

    l1_acc = jnp.zeros((1, 1), jnp.float32)
    diffs = []
    for p_ref in p_refs:
        d = p_ref[...].astype(jnp.float32) - t
        if has_tail:
            d = jnp.where(valid, d, 0.0)  # keep a select (not a multiply): OOB rows are garbage
        l1_acc = l1_acc + jnp.sum(jnp.abs(d), keepdims=True)
        diffs.append(d.astype(jnp.bfloat16))
    l1_ref[...] = l1_acc

    d_all = diffs[0] if n_preds == 1 else jnp.concatenate(diffs, axis=0)

    # Full 2-D rfft2 of the difference(s) as one lane-dense bf16 MXU matmul, f32 acc.
    ri = jnp.dot(d_all, dft_ref[...], preferred_element_type=jnp.float32)
    re = ri[:, :hf_pad]          # hf_pad is a multiple of 128: tile-aligned split
    im = ri[:, hf_pad:]
    mag = jnp.sqrt(re * re + im * im)  # padded columns are exactly 0 -> contribute 0
    freq_ref[...] = jnp.sum(mag, keepdims=True)


@functools.lru_cache(maxsize=None)
def _rfft2_dft_matrix(h, w, hf_pad):
    """Host-precomputed dense real-input 2-D DFT matrix, bf16, shape (H*W, 2*hf_pad).

    Columns [0:hf] hold Re, [hf_pad:hf_pad+hf] hold Im; the rest are exact zeros
    (lane alignment padding).  X[k, f] = sum_{h,w} x[h,w] exp(-2*pi*i*(h*k/H + w*f/W)),
    f in [0, W//2].  Phases built with exact integer modular arithmetic in float64.
    """
    f = w // 2 + 1
    hf = h * f
    ph_h = (np.outer(np.arange(h), np.arange(h)) % h).astype(np.float64) / h   # (H, K)
    ph_w = (np.outer(np.arange(w), np.arange(f)) % w).astype(np.float64) / w   # (W, F)
    theta = 2.0 * np.pi * (ph_h[:, None, :, None] + ph_w[None, :, None, :])    # (H,W,K,F)
    mat = np.zeros((h * w, 2 * hf_pad), dtype=np.float32)
    mat[:, :hf] = np.cos(theta).reshape(h * w, hf)
    mat[:, hf_pad:hf_pad + hf] = -np.sin(theta).reshape(h * w, hf)
    return jnp.asarray(mat, dtype=jnp.bfloat16)


def _freq_loss_sum_fallback(preds, target, loss_weight):
    # TODO(synk): replace with a separable two-stage rFFT Pallas kernel for large images.
    lw = jnp.float32(loss_weight)
    t32 = target.astype(jnp.float32)
    tf = jnp.fft.rfft2(t32)
    loss = jnp.float32(0.0)
    for p in preds:
        p32 = p.astype(jnp.float32)
        freq = jnp.mean(jnp.abs(jnp.fft.rfft2(p32) - tf))
        l1 = jnp.mean(jnp.abs(p32 - t32))
        loss = loss + lw * (jnp.float32(0.01) * freq + lw * l1)
    return loss


@functools.partial(jax.jit, static_argnames=("loss_weight",))
def _freq_loss_sum(preds, target, loss_weight=1.0):
    """sum_i FreqLoss(preds[i], target) for a shared target, via one pallas_call."""
    n_preds = len(preds)
    n, c, h, w = target.shape
    b = n * c
    f = w // 2 + 1
    hw = h * w
    hf = h * f
    hf_pad = _round_up(hf, _LANE)

    if hw * (2 * hf_pad) * 2 > _DENSE_DFT_BYTES_LIMIT:
        return _freq_loss_sum_fallback(preds, target, loss_weight)

    p2s = [p.reshape(b, hw) for p in preds]     # native dtype; contiguous reshape
    t2 = target.reshape(b, hw)
    dm = _rfft2_dft_matrix(h, w, hf_pad)        # host-built, cached, bf16

    itemsize = t2.dtype.itemsize
    # Images per grid step: bt is the MXU M dim -> as large as the VMEM budget allows.
    bt = min(b, 256, max(1, (4 * 1024 * 1024) // (hw * itemsize)))
    if bt < b:
        bt = (bt // 128) * 128 if bt >= 128 else max(8, (bt // 8) * 8)
        bt = min(bt, b)
    if b >= 256:
        # v7x has two TensorCores: ensure the "parallel" grid has >= 2 steps.
        bt = min(bt, _round_up(pl.cdiv(b, 2), 128))
    g = pl.cdiv(b, bt)
    has_tail = (b % bt) != 0

    vmem_est = (2 * (n_preds + 1) * bt * hw * itemsize   # double-buffered image blocks
                + hw * 2 * hf_pad * 2                    # single-buffered bf16 DFT matrix
                + 3 * (n_preds * bt) * 2 * hf_pad * 4    # matmul output + magnitude temps
                + (2 << 20))
    vmem_limit = int(min(max(vmem_est, 16 << 20), 56 << 20))

    kernel = functools.partial(_freq_l1_kernel, n_rows=b, hf_pad=hf_pad,
                               n_preds=n_preds, has_tail=has_tail)

    img_spec = pl.BlockSpec((bt, hw), lambda i: (i, 0))
    in_specs = [img_spec] * (n_preds + 1) + [
        # Constant index_map -> single-buffer the dominant (DFT) operand.
        pl.BlockSpec((hw, 2 * hf_pad), lambda i: (0, 0), pipeline_mode=pl.Buffered(1)),
    ]

    freq_part, l1_part = pl.pallas_call(
        kernel,
        out_shape=(
            jax.ShapeDtypeStruct((g, 1), jnp.float32),
            jax.ShapeDtypeStruct((g, 1), jnp.float32),
        ),
        grid_spec=pltpu.PrefetchScalarGridSpec(
            num_scalar_prefetch=0,
            grid=(g,),
            in_specs=in_specs,
            out_specs=(
                pl.BlockSpec((1, 1), lambda i: (i, 0)),
                pl.BlockSpec((1, 1), lambda i: (i, 0)),
            ),
        ),
        compiler_params=pltpu.CompilerParams(
            dimension_semantics=("parallel",),
            vmem_limit_bytes=vmem_limit,
        ),
    )(*p2s, t2, dm)

    lw = jnp.float32(loss_weight)
    # Denominators use the UNPADDED hf; padded DFT columns contribute exact zeros.
    freq_mean_sum = jnp.sum(freq_part) / jnp.float32(b * hf)
    l1_mean_sum = jnp.sum(l1_part) / jnp.float32(b * hw)
    return lw * (jnp.float32(0.01) * freq_mean_sum + lw * l1_mean_sum)


def freq_loss(pred, target, loss_weight=1.0):
    """Pallas FreqLoss.forward (tensor branch)."""
    return _freq_loss_sum([pred], target, loss_weight=loss_weight)


def pansr_freq_loss(pred_list, target, lr, loss_weight=1.0):
    """Pallas PANSRFreqLoss.forward.

    The two HR-branch FreqLoss calls (pred[1], pred[2] vs the same target) are fused
    into one pallas_call; the sum of their losses equals the fused partial-sum form.
    """
    loss = _freq_loss_sum([pred_list[0]], lr, loss_weight=loss_weight)
    loss = loss + _freq_loss_sum([pred_list[1], pred_list[2]], target,
                                 loss_weight=loss_weight)
    return loss


# ---------------------------------------------------------------------------
# Pure-JAX reference (sanity check only).
def _freq_loss_ref(pred, target, loss_weight=1.0):
    diff = jnp.fft.rfft2(pred) - jnp.fft.rfft2(target)
    loss_freq = jnp.mean(jnp.abs(diff))
    l1 = loss_weight * jnp.mean(jnp.abs(pred - target))
    return loss_weight * (loss_freq * 0.01 + l1)


def _pansr_freq_loss_ref(pred_list, target, lr, loss_weight=1.0):
    return (_freq_loss_ref(pred_list[0], lr, loss_weight)
            + _freq_loss_ref(pred_list[1], target, loss_weight)
            + _freq_loss_ref(pred_list[2], target, loss_weight))


if __name__ == "__main__":
    key = jax.random.PRNGKey(0)
    k0, k1, k2, k3, k4 = jax.random.split(key, 5)

    n, c = 2, 4
    lr_sz, hr_sz = 8, 16
    # PANSR: pred is a list of 3 network outputs; pred[0] matches lr's shape,
    # pred[1] and pred[2] match target's shape.
    pred = [
        jax.random.normal(k0, (n, c, lr_sz, lr_sz), dtype=jnp.float32),
        jax.random.normal(k1, (n, c, hr_sz, hr_sz), dtype=jnp.float32),
        jax.random.normal(k2, (n, c, hr_sz, hr_sz), dtype=jnp.float32),
    ]
    target = jax.random.normal(k3, (n, c, hr_sz, hr_sz), dtype=jnp.float32)
    lr = jax.random.normal(k4, (n, c, lr_sz, lr_sz), dtype=jnp.float32)

    loss = pansr_freq_loss(pred, target, lr, loss_weight=1.0)
    jax.block_until_ready(loss)

    ref = _pansr_freq_loss_ref(pred, target, lr, loss_weight=1.0)
    jax.block_until_ready(ref)
    err = abs(float(loss) - float(ref)) / max(abs(float(ref)), 1e-6)
    if err > 5e-2:
        raise AssertionError(f"mismatch vs reference: {float(loss)} vs {float(ref)}")

    print("KERNEL_OK")
</pallas_src>

<mosaic_0001>
module attributes {stable_mosaic.version = 11 : i64} {
  func.func @_freq_l1_kernel(%arg0: i32, %arg1: memref<8x64xf32, #tpu.memory_space<vmem>>, %arg2: memref<8x64xf32, #tpu.memory_space<vmem>>, %arg3: memref<64x256xbf16, #tpu.memory_space<vmem>>, %arg4: memref<1x1xf32, #tpu.memory_space<vmem>>, %arg5: memref<1x1xf32, #tpu.memory_space<vmem>>) attributes {dimension_semantics = [#tpu.dimension_semantics<parallel>], iteration_bounds = array<i64: 1>, scalar_prefetch = 0 : i64, scratch_operands = 0 : i64, tpu.core_type = #tpu.core_type<tc>, window_params = [{transform_indices = @transform_0, window_bounds = array<i64: 8, 64>}, {transform_indices = @transform_1, window_bounds = array<i64: 8, 64>}, {pipeline_mode = #tpu.pipeline_mode<synchronous>, transform_indices = @transform_2, window_bounds = array<i64: 64, 256>}, {transform_indices = @transform_3, window_bounds = array<i64: 1, 1>}, {transform_indices = @transform_4, window_bounds = array<i64: 1, 1>}]} {
    %c0 = arith.constant 0 : index
    %c0_0 = arith.constant 0 : index
    %0 = vector.load %arg2[%c0, %c0_0] : memref<8x64xf32, #tpu.memory_space<vmem>>, vector<8x64xf32>
    %cst = arith.constant 0.000000e+00 : f32
    %1 = vector.broadcast %cst : f32 to vector<1x1xf32>
    %c0_1 = arith.constant 0 : index
    %c0_2 = arith.constant 0 : index
    %2 = vector.load %arg1[%c0_1, %c0_2] : memref<8x64xf32, #tpu.memory_space<vmem>>, vector<8x64xf32>
    %3 = arith.subf %2, %0 : vector<8x64xf32>
    %4 = math.absf %3 : vector<8x64xf32>
    %5 = vector.shape_cast %4 : vector<8x64xf32> to vector<1x8x64xf32>
    %cst_3 = arith.constant dense<0.000000e+00> : vector<1xf32>
    %6 = vector.multi_reduction <add>, %5, %cst_3 [1, 2] : vector<1x8x64xf32> to vector<1xf32>
    %7 = vector.shape_cast %6 : vector<1xf32> to vector<1x1x1xf32>
    %8 = vector.extract %7[0, 0, 0] : f32 from vector<1x1x1xf32>
    %9 = vector.broadcast %8 : f32 to vector<1x1xf32>
    %10 = arith.addf %1, %9 : vector<1x1xf32>
    %11 = arith.truncf %3 : vector<8x64xf32> to vector<8x64xbf16>
    %c0_4 = arith.constant 0 : index
    %c0_5 = arith.constant 0 : index
    %12 = vector.load %arg5[%c0_4, %c0_5] : memref<1x1xf32, #tpu.memory_space<vmem>>, vector<1x1xf32>
    tpu.vector_store %arg5[%c0_4, %c0_5], %10 {strides = array<i32>} : memref<1x1xf32, #tpu.memory_space<vmem>>, vector<1x1xf32>,
    %c0_6 = arith.constant 0 : index
    %c0_7 = arith.constant 0 : index
    %13 = vector.load %arg3[%c0_6, %c0_7] : memref<64x256xbf16, #tpu.memory_space<vmem>>, vector<64x256xbf16>
    %cst_8 = arith.constant dense<0.000000e+00> : vector<8x256xf32>
    %14 = tpu.matmul %11, %13, %cst_8 {dimension_numbers = #tpu.dot_dimension_numbers<[1], [0], [0], [1], [0, 0, 1, 1], [], []>} : vector<8x64xbf16>, vector<64x256xbf16>, vector<8x256xf32> -> vector<8x256xf32>
    %15 = vector.extract_strided_slice %14 {offsets = [0, 0], sizes = [8, 128], strides = [1, 1]} : vector<8x256xf32> to vector<8x128xf32>
    %16 = vector.extract_strided_slice %14 {offsets = [0, 128], sizes = [8, 128], strides = [1, 1]} : vector<8x256xf32> to vector<8x128xf32>
    %17 = arith.mulf %15, %15 : vector<8x128xf32>
    %18 = arith.mulf %16, %16 : vector<8x128xf32>
    %19 = arith.addf %17, %18 : vector<8x128xf32>
    %20 = math.sqrt %19 : vector<8x128xf32>
    %21 = vector.shape_cast %20 : vector<8x128xf32> to vector<1x8x128xf32>
    %cst_9 = arith.constant dense<0.000000e+00> : vector<1xf32>
    %22 = vector.multi_reduction <add>, %21, %cst_9 [1, 2] : vector<1x8x128xf32> to vector<1xf32>
    %23 = vector.shape_cast %22 : vector<1xf32> to vector<1x1x1xf32>
    %24 = vector.extract %23[0, 0, 0] : f32 from vector<1x1x1xf32>
    %25 = vector.broadcast %24 : f32 to vector<1x1xf32>
    %c0_10 = arith.constant 0 : index
    %c0_11 = arith.constant 0 : index
    %26 = vector.load %arg4[%c0_10, %c0_11] : memref<1x1xf32, #tpu.memory_space<vmem>>, vector<1x1xf32>
    tpu.vector_store %arg4[%c0_10, %c0_11], %25 {strides = array<i32>} : memref<1x1xf32, #tpu.memory_space<vmem>>, vector<1x1xf32>,
    return
  }
  func.func @transform_0(%arg0: i32) -> (i32, i32) {
    %c0_i32 = arith.constant 0 : i32
    %c0_i32_0 = arith.constant 0 : i32
    return %arg0, %c0_i32 : i32, i32
  }
  func.func @transform_1(%arg0: i32) -> (i32, i32) {
    %c0_i32 = arith.constant 0 : i32
    %c0_i32_0 = arith.constant 0 : i32
    return %arg0, %c0_i32 : i32, i32
  }
  func.func @transform_2(%arg0: i32) -> (i32, i32) {
    %c0_i32 = arith.constant 0 : i32
    %c0_i32_0 = arith.constant 0 : i32
    %c0_i32_1 = arith.constant 0 : i32
    return %c0_i32, %c0_i32_0 : i32, i32
  }
  func.func @transform_3(%arg0: i32) -> (i32, i32) {
    %c0_i32 = arith.constant 0 : i32
    %c0_i32_0 = arith.constant 0 : i32
    return %arg0, %c0_i32 : i32, i32
  }
  func.func @transform_4(%arg0: i32) -> (i32, i32) {
    %c0_i32 = arith.constant 0 : i32
    %c0_i32_0 = arith.constant 0 : i32
    return %arg0, %c0_i32 : i32, i32
  }
}

</mosaic_0001>

<llo_original>
// kernel: _freq_loss_sum.1
$region0: #{_freq_loss_sum.1}
  #allocation0 [shape = 'u32[]', space=smem, size = 0x4, offset = 0x4, fixed_abs, tag = 'smem constant byte address 0x4 - core index']
  #allocation1 [shape = 'u32[144,128]{1,0:T(1,128)}', space=vmem, size = 0x12000, scoped, tag = 'internal scratch']
  %s0 = inlined_call_operand.vmem [shape: f32[8,64], index: 0, kind: input, shape index: {}]
  %s1 = inlined_call_operand.vmem [shape: f32[8,64], index: 1, kind: input, shape index: {}]
  %s2 = inlined_call_operand.vmem [shape: bf16[64,256], index: 2, kind: input, shape index: {}]
  %s3 = inlined_call_operand.hbm [shape: f32[1,1], index: 3, kind: output, shape index: {0}]
  %s4 = inlined_call_operand.hbm [shape: f32[1,1], index: 4, kind: output, shape index: {1}]
  %5 = xla_tuple %s3, %s4
  %s6 = sld [smem:[#allocation0]]
  $region30: #{_freq_loss_sum.1} parent=0
    _
  %s8 = ssub.s32 1, %s6
  %s9 = scalar_select 0, %s8, %s6
  $region1: #{_freq_loss_sum.1} parent=0
    #allocation2 [shape = 'u8[512]{0}', space=vmem, size = 0x400, scoped, tag = 'output window, operand 0, single buffered']
    #allocation3 [shape = 's32[1]{0}', space=sflag, size = 0x4, scoped, tag = 'scoped memory for _freq_loss_sum.1']
    #allocation4 [shape = 'u8[512]{0}', space=vmem, size = 0x400, scoped, tag = 'output window, operand 1, single buffered']
    #allocation5 [shape = 's32[1]{0}', space=sflag, size = 0x4, scoped, tag = 'scoped memory for _freq_loss_sum.1']
    %10 = vsyncpa [#allocation3], 0
    %11 = vsyncpa [#allocation5], 0
    // Predicated region
    $region2: #{_freq_loss_sum.1} parent=1 // pred_check
      _
    $region3: #{_freq_loss_sum.1} parent=1 // pred_check_branch
      %13 = sbr.rel (0) target = $region5
    $region4: #{_freq_loss_sum.1} parent=1 // pred_region
      _
    $region5: #{_freq_loss_sum.1} parent=1 // pred_fallthru
      _
    // Predicated region
    $region6: #{_freq_loss_sum.1} parent=1 // pred_check
      _
    $region7: #{_freq_loss_sum.1} parent=1 // pred_check_branch
      %15 = sbr.rel (0) target = $region9
    $region8: #{_freq_loss_sum.1} parent=1 // pred_region
      _
    $region9: #{_freq_loss_sum.1} parent=1 // pred_fallthru
      _
    // Predicated region
    $region10: #{_freq_loss_sum.1} parent=1 // pred_check
      _
    $region11: #{_freq_loss_sum.1} parent=1 // pred_check_branch
      %17 = sbr.rel (0) target = $region13
    $region12: #{_freq_loss_sum.1} parent=1 // pred_region
      _
    $region13: #{_freq_loss_sum.1} parent=1 // pred_fallthru
      _
    %v19 = vld [vmem:[%s1] sm:$0xff]
    %v20 = vld [vmem:[%s0] sm:$0xff]
    %v21 = vsub.f32 %v20, %v19
    %v22 = vand.u32 2147483647, %v21
    %vm23 = vcmask 523264
    %v24 = vsel %vm23, %v22, 0.0
    %25 = vadd.xlane.f32.xlu0 %v24
    %v26 = vpop.xlane.xlu0 %25
    %v27 = vrot.slane %v26, 4
    %v28 = vadd.f32 %v26, %v27
    %v29 = vrot.slane %v28, 2
    %v30 = vadd.f32 %v28, %v29
    %v31 = vrot.slane %v30, 1
    %v32 = vadd.f32 %v30, %v31
    %s33 = vtos %v32
    %v34 = vstv %s33
    %v35 = vadd.f32 %v34, 0.0
    %v36 = vpack.c.bf16 %v21, %v21
    %vm37 = vcmask 0
    %38 = vst.msk [vmem:[#allocation4] sm:$0x1] %vm37, %v35
    %v39 = vld [vmem:[%s2] sm:$0xff]
    %v40 = vld [vmem:[%s2 + $0x8] sm:$0xff]
    %v41 = vld [vmem:[%s2 + $0x10] sm:$0xff]
    %v42 = vld [vmem:[%s2 + $0x18] sm:$0xff]
    %v43 = vld [vmem:[%s2 + $0x20] sm:$0xff]
    %v44 = vld [vmem:[%s2 + $0x28] sm:$0xff]
    %v45 = vld [vmem:[%s2 + $0x30] sm:$0xff]
    %v46 = vld [vmem:[%s2 + $0x38] sm:$0xff]
    %v55 = vunpack.c.l.b16 %v39
    %v56 = vunpack.c.h.b16 %v39
    %v57 = vunpack.c.l.b16 %v40
    %v58 = vunpack.c.h.b16 %v40
    %v59 = vunpack.c.l.b16 %v41
    %v60 = vunpack.c.h.b16 %v41
    %v61 = vunpack.c.l.b16 %v42
    %v62 = vunpack.c.h.b16 %v42
    %v63 = vunpack.c.l.b16 %v43
    %v64 = vunpack.c.h.b16 %v43
    %v65 = vunpack.c.l.b16 %v44
    %v66 = vunpack.c.h.b16 %v44
    %v67 = vunpack.c.l.b16 %v45
    %v68 = vunpack.c.h.b16 %v45
    %v69 = vunpack.c.l.b16 %v46
    %v70 = vunpack.c.h.b16 %v46
    %v71 = vpack.c.b16 %v57, %v55
    %v72 = vpack.c.b16 %v58, %v56
    %v73 = vpack.c.b16 %v61, %v59
    %v74 = vpack.c.b16 %v62, %v60
    %v75 = vpack.c.b16 %v65, %v63
    %v76 = vpack.c.b16 %v66, %v64
    %v77 = vpack.c.b16 %v69, %v67
    %v78 = vpack.c.b16 %v70, %v68
    %v88 = vsel %vm23, %v36, 0
    %90 = vmatprep.subr.bf16.mxu0 0
    %91 = vmatpush1.bf16.msra.mxu0 0
    %92 = vmatprep.subr.bf16.mxu0 0
    %93 = vmatpush1.bf16.msra.mxu0 0
    %94 = vmatprep.subr.bf16.mxu0 0
    %95 = vmatpush1.bf16.msra.mxu0 0
    %96 = vmatprep.subr.bf16.mxu0 0
    %97 = vmatpush1.bf16.msra.mxu0 0
    %98 = vmatprep.subr.bf16.mxu0 %v78
    %99 = vmatpush1.bf16.msra.mxu0 %v77
    %100 = vmatprep.subr.bf16.mxu0 %v76
    %101 = vmatpush1.bf16.msra.mxu0 %v75
    %102 = vmatprep.subr.bf16.mxu0 %v74
    %103 = vmatpush1.bf16.msra.mxu0 %v73
    %104 = vmatprep.subr.bf16.mxu0 %v72
    %105 = vmatpush1.bf16.msra.mxu0 %v71
    %106 = vmatprep.subr.bf16.mxu0 0
    %107 = vmatpush2.bf16.msra.mxu0 0
    %108 = vmatprep.subr.bf16.mxu0 0
    %109 = vmatpush2.bf16.msra.mxu0 0
    %110 = vmatprep.subr.bf16.mxu0 0
    %111 = vmatpush2.bf16.msra.mxu0 0
    %112 = vmatprep.subr.bf16.mxu0 0
    %113 = vmatpush2.bf16.msra.mxu0 0
    %114 = vmatprep.subr.bf16.mxu0 0
    %115 = vmatpush2.bf16.msra.mxu0 0
    %116 = vmatprep.subr.bf16.mxu0 0
    %117 = vmatpush2.bf16.msra.mxu0 0
    %118 = vmatprep.subr.bf16.mxu0 0
    %119 = vmatpush2.bf16.msra.mxu0 0
    %120 = vmatprep.subr.bf16.mxu0 0
    %121 = vmatpush2.bf16.msra.mxu0 0
    %122 = vmatprep.mubr.bf16.mxu0 0
    %123 = vmatmul.mubr.bf16.gmra.mxu0 %v88
    %v124 = vpop.f32.mrf.mxu0
    %v125 = vadd.f32 0.0, %v124
    %v126 = vpop.f32.mrf.mxu0
    %v127 = vadd.f32 0.0, %v126
    %v128 = vpop.f32.mrf.mxu0
    %v129 = vpop.f32.mrf.mxu0
    %130 = vdwg.mxu0
    %v131 = vmul.f32 %v125, %v125
    %v132 = vmul.f32 %v127, %v127
    %v133 = vadd.f32 %v131, %v132
    %v134 = vrsqrt.pop %v133
    %v135 = vmul.f32 %v133, %v134
    %vm136 = vcmp.eq.f32.partialorder %v133, inf
    %v137 = vsel %vm136, %v133, %v135
    %vm138 = vcmp.eq.f32.partialorder %v133, 0.0
    %v139 = vand.u32 %v133, 2147483648
    %v140 = vsel %vm138, %v139, %v137
    %141 = vadd.xlane.f32.xlu0 %v140
    %v142 = vpop.xlane.xlu0 %141
    %v143 = vrot.slane %v142, 4
    %v144 = vadd.f32 %v142, %v143
    %v145 = vrot.slane %v144, 2
    %v146 = vadd.f32 %v144, %v145
    %v147 = vrot.slane %v146, 1
    %v148 = vadd.f32 %v146, %v147
    %s149 = vtos %v148
    %v150 = vstv %s149
    %151 = vst.msk [vmem:[#allocation2] sm:$0x1] %vm37, %v150
    // Predicated region
    $region14: #{_freq_loss_sum.1} parent=1 // pred_check
      _
    $region15: #{_freq_loss_sum.1} parent=1 // pred_check_branch
      %153 = sbr.rel (0) target = $region17
    $region16: #{_freq_loss_sum.1} parent=1 // pred_region
      %s155 = ssub.s32 16, 16
      %156 = vsyncadd [#allocation3], %s155
      %s158 = sshll.u32 [#allocation2], 4
      %s159 = int_to_ptr.vmem [resolvable:$true] %s158
      %161 = dma.vmem_to_hbm [thread:$0]  %s159, 16, %s3, [#allocation3]
    $region17: #{_freq_loss_sum.1} parent=1 // pred_fallthru
      _
    // Predicated region
    $region18: #{_freq_loss_sum.1} parent=1 // pred_check
      _
    $region19: #{_freq_loss_sum.1} parent=1 // pred_check_branch
      %163 = sbr.rel (0) target = $region21
    $region20: #{_freq_loss_sum.1} parent=1 // pred_region
      %s165 = ssub.s32 16, 16
      %166 = vsyncadd [#allocation5], %s165
      %s168 = sshll.u32 [#allocation4], 4
      %s169 = int_to_ptr.vmem [resolvable:$true] %s168
      %171 = dma.vmem_to_hbm [thread:$0]  %s169, 16, %s4, [#allocation5]
    $region21: #{_freq_loss_sum.1} parent=1 // pred_fallthru
      _
    // Predicated region
    $region22: #{_freq_loss_sum.1} parent=1 // pred_check
      _
    $region23: #{_freq_loss_sum.1} parent=1 // pred_check_branch
      %173 = sbr.rel (0) target = $region25
    $region24: #{_freq_loss_sum.1} parent=1 // pred_region
      %174 = dma.done [#allocation3], 16
    $region25: #{_freq_loss_sum.1} parent=1 // pred_fallthru
      _
    // Predicated region
    $region26: #{_freq_loss_sum.1} parent=1 // pred_check
      _
    $region27: #{_freq_loss_sum.1} parent=1 // pred_check_branch
      %176 = sbr.rel (0) target = $region29
    $region28: #{_freq_loss_sum.1} parent=1 // pred_region
      %177 = dma.done [#allocation5], 16
    $region29: #{_freq_loss_sum.1} parent=1 // pred_fallthru
      _
    %178 = vsyncpa [#allocation3], 1
    %179 = vsyncpa [#allocation5], 1

</llo_original>
